<compile_context>
chip_gen: v7x
topology: tpu7x:2x2x1
jax: 0.10.0
libtpu: 0.0.40
codegen_flags: <defaults>
</compile_context>

<pallas_src>
import functools

import jax
import jax.numpy as jnp
from jax import lax
from jax.experimental import pallas as pl
from jax.experimental.pallas import tpu as pltpu

LN_EPS = 1e-5      # torch.nn.LayerNorm default
LANE = 128         # TPU lane width
SUBLANE = 8        # TPU sublane count (f32)
TILE_B_MAX = 512   # batch tile cap; >=256 rows amortizes ~0.35us/step overhead


def _round_up(n, m):
    return ((n + m - 1) // m) * m


def _fused_mlp_kernel(*refs, num_layers, true_dims):
    """One batch tile of the fused stack: h = LN(ReLU(h @ W + b)) per layer.

    refs = (x_ref, w0, b0, g0, beta0, w1, b1, g1, beta1, ..., o_ref)

    Weights are bf16 (MXU-native); bias/gamma/beta and all LN math are f32.
    Padded weight rows/cols, bias, gamma and beta are zero, so padded
    activation columns are exactly 0 at every stage. The LayerNorm variance
    uses the exact correction term for the padded columns (each contributes
    mean^2 to sum(centered^2)), avoiding a per-layer iota/where mask.
    """
    x_ref = refs[0]
    o_ref = refs[1 + 4 * num_layers]

    h = x_ref[...].astype(jnp.float32)
    for layer in range(num_layers):          # unrolled: small fixed stack
        w_ref, b_ref, g_ref, beta_ref = refs[1 + 4 * layer: 5 + 4 * layer]
        d_true = true_dims[layer]
        d_pad = w_ref.shape[1]

        # MXU matmul: bf16 operands, f32 accumulation. Bias + ReLU on VPU.
        h = jnp.dot(h.astype(jnp.bfloat16), w_ref[...],
                    preferred_element_type=jnp.float32)
        h = jnp.maximum(h + b_ref[...], 0.0)   # padded cols stay exactly 0

        # LayerNorm over the true feature count.
        inv_d = 1.0 / d_true
        mean = jnp.sum(h, axis=-1, keepdims=True) * inv_d   # padded cols add 0
        centered = h - mean
        sq = jnp.sum(centered * centered, axis=-1, keepdims=True)
        n_padded = d_pad - d_true
        if n_padded:
            # padded cols have centered == -mean -> remove their contribution.
            sq = sq - n_padded * (mean * mean)
        var = sq * inv_d
        inv_std = lax.rsqrt(var + LN_EPS)
        # gamma/beta zero-padded -> padded cols of h return to exactly 0.
        h = centered * inv_std * g_ref[...] + beta_ref[...]

    o_ref[...] = h.astype(o_ref.dtype)


def init_mlp_params(key, input_dim, hidden_sizes):
    """Matches MLPLayer init semantics: orthogonal weights with ReLU gain
    sqrt(2), zero bias, LayerNorm gamma=1, beta=0."""
    gain = jnp.sqrt(2.0)  # nn.init.calculate_gain('relu')
    ortho = jax.nn.initializers.orthogonal(scale=gain)
    params = []
    dims = [input_dim] + list(hidden_sizes)
    for i in range(len(hidden_sizes)):
        key, sub = jax.random.split(key)
        d_in, d_out = dims[i], dims[i + 1]
        w = ortho(sub, (d_in, d_out), jnp.float32)   # stored (D_in, D_out)
        b = jnp.zeros((1, d_out), jnp.float32)
        gamma = jnp.ones((1, d_out), jnp.float32)
        beta = jnp.zeros((1, d_out), jnp.float32)
        params.append((w, b, gamma, beta))
    return params


def pad_params(params, input_dim):
    """One-time pre-padding of all parameters to lane-dense (x128) feature
    dims. Weights are stored bf16 (MXU native, halves weight DMA bytes);
    bias/gamma/beta stay f32. Padded entries are zero everywhere."""
    padded = []
    true_dims = []
    d_prev_pad = _round_up(input_dim, LANE)
    for (w, b, gamma, beta) in params:
        d_in, d_out = w.shape
        d_out_pad = _round_up(d_out, LANE)
        w_p = (jnp.zeros((d_prev_pad, d_out_pad), jnp.bfloat16)
               .at[:d_in, :d_out].set(w.astype(jnp.bfloat16)))
        b_p = jnp.zeros((1, d_out_pad), jnp.float32).at[:, :d_out].set(b)
        g_p = jnp.zeros((1, d_out_pad), jnp.float32).at[:, :d_out].set(gamma)
        be_p = jnp.zeros((1, d_out_pad), jnp.float32).at[:, :d_out].set(beta)
        padded.append((w_p, b_p, g_p, be_p))
        true_dims.append(d_out)
        d_prev_pad = d_out_pad
    return padded, tuple(true_dims)


def mlp_layer_forward(x, padded_params, true_dims):
    """Forward pass of MLPLayer as a single fused Pallas kernel.

    x: (B, D_in) f32 (unpadded). Returns (B, hidden_sizes[-1]) f32.
    Batch is tiled over a 1-D "parallel" grid; weights are VMEM-resident
    across grid steps via constant-index BlockSpecs.
    """
    B, d_in = x.shape
    d_in_pad = padded_params[0][0].shape[0]
    assert _round_up(d_in, LANE) == d_in_pad, "params padded for a different D_in"

    tile_b = min(_round_up(max(B, SUBLANE), SUBLANE), TILE_B_MAX)
    B_pad = _round_up(max(B, SUBLANE), tile_b)

    if B_pad == B and d_in_pad == d_in:
        x_p = x  # fast path: no extra HBM pad round trip
    else:
        x_p = jnp.zeros((B_pad, d_in_pad), x.dtype).at[:B, :d_in].set(x)

    flat = []
    in_specs = [pl.BlockSpec((tile_b, d_in_pad), lambda i: (i, 0))]
    for (w_p, b_p, g_p, be_p) in padded_params:
        flat.extend((w_p, b_p, g_p, be_p))
        din_p, dout_p = w_p.shape
        # Constant block index -> fetched once, resident across grid steps.
        in_specs.append(pl.BlockSpec((din_p, dout_p), lambda i: (0, 0)))
        in_specs.append(pl.BlockSpec((1, dout_p), lambda i: (0, 0)))
        in_specs.append(pl.BlockSpec((1, dout_p), lambda i: (0, 0)))
        in_specs.append(pl.BlockSpec((1, dout_p), lambda i: (0, 0)))

    num_layers = len(padded_params)
    d_out_pad = padded_params[-1][0].shape[1]

    kernel = functools.partial(
        _fused_mlp_kernel, num_layers=num_layers, true_dims=true_dims)

    out_p = pl.pallas_call(
        kernel,
        grid=(B_pad // tile_b,),
        in_specs=in_specs,
        out_specs=pl.BlockSpec((tile_b, d_out_pad), lambda i: (i, 0)),
        out_shape=jax.ShapeDtypeStruct((B_pad, d_out_pad), x.dtype),
        compiler_params=pltpu.CompilerParams(
            dimension_semantics=("parallel",)),
    )(x_p, *flat)

    if B_pad == B and d_out_pad == true_dims[-1]:
        return out_p
    return out_p[:B, :true_dims[-1]]


def mlp_layer_ref(x, params, matmul_dtype=jnp.float32):
    """Pure-JAX reference (unpadded). matmul_dtype lets us check both the
    original f32 semantics and the bf16-operand matmul the kernel performs."""
    h = x.astype(jnp.float32)
    for (w, b, gamma, beta) in params:
        h = jnp.dot(h.astype(matmul_dtype), w.astype(matmul_dtype),
                    preferred_element_type=jnp.float32)
        h = jnp.maximum(h + b, 0.0)
        mean = jnp.mean(h, axis=-1, keepdims=True)
        var = jnp.mean((h - mean) ** 2, axis=-1, keepdims=True)
        h = (h - mean) * lax.rsqrt(var + LN_EPS) * gamma + beta
    return h


if __name__ == "__main__":
    key = jax.random.PRNGKey(0)
    k_x, k_p = jax.random.split(key)

    batch = 8
    input_dim = 32
    hidden_sizes = (64, 64)

    x = jax.random.normal(k_x, (batch, input_dim), jnp.float32)
    params = init_mlp_params(k_p, input_dim, hidden_sizes)
    padded_params, true_dims = pad_params(params, input_dim)

    out = mlp_layer_forward(x, padded_params, true_dims)
    out = jax.block_until_ready(out)

    assert out.shape == (batch, hidden_sizes[-1])

    # Tight structural check against a reference using the same bf16-operand
    # matmuls (f32 accumulation), plus a looser sanity check against the
    # original all-f32 semantics (bf16 operands introduce ~1e-3..1e-2 error).
    ref_mixed = mlp_layer_ref(x, params, matmul_dtype=jnp.bfloat16)
    ref_f32 = mlp_layer_ref(x, params, matmul_dtype=jnp.float32)
    assert jnp.allclose(out, ref_mixed, atol=1e-3, rtol=1e-3), \
        "mismatch vs bf16-matmul reference"
    assert jnp.allclose(out, ref_f32, atol=5e-2, rtol=5e-2), \
        "mismatch vs f32 reference"

    print("KERNEL_OK")
</pallas_src>

<mosaic_0001>
module attributes {stable_mosaic.version = 11 : i64} {
  func.func @_fused_mlp_kernel(%arg0: i32, %arg1: memref<8x128xf32, #tpu.memory_space<vmem>>, %arg2: memref<128x128xbf16, #tpu.memory_space<vmem>>, %arg3: memref<1x128xf32, #tpu.memory_space<vmem>>, %arg4: memref<1x128xf32, #tpu.memory_space<vmem>>, %arg5: memref<1x128xf32, #tpu.memory_space<vmem>>, %arg6: memref<128x128xbf16, #tpu.memory_space<vmem>>, %arg7: memref<1x128xf32, #tpu.memory_space<vmem>>, %arg8: memref<1x128xf32, #tpu.memory_space<vmem>>, %arg9: memref<1x128xf32, #tpu.memory_space<vmem>>, %arg10: memref<8x128xf32, #tpu.memory_space<vmem>>) attributes {dimension_semantics = [#tpu.dimension_semantics<parallel>], iteration_bounds = array<i64: 1>, scalar_prefetch = 0 : i64, scratch_operands = 0 : i64, tpu.core_type = #tpu.core_type<tc>, window_params = [{transform_indices = @transform_0, window_bounds = array<i64: 8, 128>}, {pipeline_mode = #tpu.pipeline_mode<synchronous>, transform_indices = @transform_1, window_bounds = array<i64: 128, 128>}, {pipeline_mode = #tpu.pipeline_mode<synchronous>, transform_indices = @transform_2, window_bounds = array<i64: 1, 128>}, {pipeline_mode = #tpu.pipeline_mode<synchronous>, transform_indices = @transform_3, window_bounds = array<i64: 1, 128>}, {pipeline_mode = #tpu.pipeline_mode<synchronous>, transform_indices = @transform_4, window_bounds = array<i64: 1, 128>}, {pipeline_mode = #tpu.pipeline_mode<synchronous>, transform_indices = @transform_5, window_bounds = array<i64: 128, 128>}, {pipeline_mode = #tpu.pipeline_mode<synchronous>, transform_indices = @transform_6, window_bounds = array<i64: 1, 128>}, {pipeline_mode = #tpu.pipeline_mode<synchronous>, transform_indices = @transform_7, window_bounds = array<i64: 1, 128>}, {pipeline_mode = #tpu.pipeline_mode<synchronous>, transform_indices = @transform_8, window_bounds = array<i64: 1, 128>}, {transform_indices = @transform_9, window_bounds = array<i64: 8, 128>}]} {
    %c0 = arith.constant 0 : index
    %c0_0 = arith.constant 0 : index
    %0 = vector.load %arg1[%c0, %c0_0] : memref<8x128xf32, #tpu.memory_space<vmem>>, vector<8x128xf32>
    %1 = arith.truncf %0 : vector<8x128xf32> to vector<8x128xbf16>
    %c0_1 = arith.constant 0 : index
    %c0_2 = arith.constant 0 : index
    %2 = vector.load %arg2[%c0_1, %c0_2] : memref<128x128xbf16, #tpu.memory_space<vmem>>, vector<128x128xbf16>
    %cst = arith.constant dense<0.000000e+00> : vector<8x128xf32>
    %3 = tpu.matmul %1, %2, %cst {dimension_numbers = #tpu.dot_dimension_numbers<[1], [0], [0], [1], [0, 0, 1, 1], [], []>} : vector<8x128xbf16>, vector<128x128xbf16>, vector<8x128xf32> -> vector<8x128xf32>
    %c0_3 = arith.constant 0 : index
    %c0_4 = arith.constant 0 : index
    %4 = vector.load %arg3[%c0_3, %c0_4] : memref<1x128xf32, #tpu.memory_space<vmem>>, vector<1x128xf32>
    %5 = vector.broadcast %4 : vector<1x128xf32> to vector<8x128xf32>
    %6 = arith.addf %3, %5 : vector<8x128xf32>
    %cst_5 = arith.constant 0.000000e+00 : f32
    %7 = vector.broadcast %cst_5 : f32 to vector<8x128xf32>
    %8 = arith.maximumf %6, %7 : vector<8x128xf32>
    %cst_6 = arith.constant dense<0.000000e+00> : vector<8xf32>
    %9 = vector.multi_reduction <add>, %8, %cst_6 [1] : vector<8x128xf32> to vector<8xf32>
    %10 = vector.shape_cast %9 : vector<8xf32> to vector<8x1xf32>
    %cst_7 = arith.constant 1.562500e-02 : f32
    %11 = vector.broadcast %cst_7 : f32 to vector<8x1xf32>
    %12 = arith.mulf %10, %11 : vector<8x1xf32>
    %13 = vector.broadcast %12 : vector<8x1xf32> to vector<8x128xf32>
    %14 = arith.subf %8, %13 : vector<8x128xf32>
    %15 = arith.mulf %14, %14 : vector<8x128xf32>
    %cst_8 = arith.constant dense<0.000000e+00> : vector<8xf32>
    %16 = vector.multi_reduction <add>, %15, %cst_8 [1] : vector<8x128xf32> to vector<8xf32>
    %17 = vector.shape_cast %16 : vector<8xf32> to vector<8x1xf32>
    %18 = arith.mulf %12, %12 : vector<8x1xf32>
    %cst_9 = arith.constant 6.400000e+01 : f32
    %19 = vector.broadcast %cst_9 : f32 to vector<8x1xf32>
    %20 = arith.mulf %19, %18 : vector<8x1xf32>
    %21 = arith.subf %17, %20 : vector<8x1xf32>
    %cst_10 = arith.constant 1.562500e-02 : f32
    %22 = vector.broadcast %cst_10 : f32 to vector<8x1xf32>
    %23 = arith.mulf %21, %22 : vector<8x1xf32>
    %cst_11 = arith.constant 9.99999974E-6 : f32
    %24 = vector.broadcast %cst_11 : f32 to vector<8x1xf32>
    %25 = arith.addf %23, %24 : vector<8x1xf32>
    %26 = math.rsqrt %25 : vector<8x1xf32>
    %27 = vector.broadcast %26 : vector<8x1xf32> to vector<8x128xf32>
    %28 = arith.mulf %14, %27 : vector<8x128xf32>
    %c0_12 = arith.constant 0 : index
    %c0_13 = arith.constant 0 : index
    %29 = vector.load %arg4[%c0_12, %c0_13] : memref<1x128xf32, #tpu.memory_space<vmem>>, vector<1x128xf32>
    %30 = vector.broadcast %29 : vector<1x128xf32> to vector<8x128xf32>
    %31 = arith.mulf %28, %30 : vector<8x128xf32>
    %c0_14 = arith.constant 0 : index
    %c0_15 = arith.constant 0 : index
    %32 = vector.load %arg5[%c0_14, %c0_15] : memref<1x128xf32, #tpu.memory_space<vmem>>, vector<1x128xf32>
    %33 = vector.broadcast %32 : vector<1x128xf32> to vector<8x128xf32>
    %34 = arith.addf %31, %33 : vector<8x128xf32>
    %35 = arith.truncf %34 : vector<8x128xf32> to vector<8x128xbf16>
    %c0_16 = arith.constant 0 : index
    %c0_17 = arith.constant 0 : index
    %36 = vector.load %arg6[%c0_16, %c0_17] : memref<128x128xbf16, #tpu.memory_space<vmem>>, vector<128x128xbf16>
    %cst_18 = arith.constant dense<0.000000e+00> : vector<8x128xf32>
    %37 = tpu.matmul %35, %36, %cst_18 {dimension_numbers = #tpu.dot_dimension_numbers<[1], [0], [0], [1], [0, 0, 1, 1], [], []>} : vector<8x128xbf16>, vector<128x128xbf16>, vector<8x128xf32> -> vector<8x128xf32>
    %c0_19 = arith.constant 0 : index
    %c0_20 = arith.constant 0 : index
    %38 = vector.load %arg7[%c0_19, %c0_20] : memref<1x128xf32, #tpu.memory_space<vmem>>, vector<1x128xf32>
    %39 = vector.broadcast %38 : vector<1x128xf32> to vector<8x128xf32>
    %40 = arith.addf %37, %39 : vector<8x128xf32>
    %cst_21 = arith.constant 0.000000e+00 : f32
    %41 = vector.broadcast %cst_21 : f32 to vector<8x128xf32>
    %42 = arith.maximumf %40, %41 : vector<8x128xf32>
    %cst_22 = arith.constant dense<0.000000e+00> : vector<8xf32>
    %43 = vector.multi_reduction <add>, %42, %cst_22 [1] : vector<8x128xf32> to vector<8xf32>
    %44 = vector.shape_cast %43 : vector<8xf32> to vector<8x1xf32>
    %cst_23 = arith.constant 1.562500e-02 : f32
    %45 = vector.broadcast %cst_23 : f32 to vector<8x1xf32>
    %46 = arith.mulf %44, %45 : vector<8x1xf32>
    %47 = vector.broadcast %46 : vector<8x1xf32> to vector<8x128xf32>
    %48 = arith.subf %42, %47 : vector<8x128xf32>
    %49 = arith.mulf %48, %48 : vector<8x128xf32>
    %cst_24 = arith.constant dense<0.000000e+00> : vector<8xf32>
    %50 = vector.multi_reduction <add>, %49, %cst_24 [1] : vector<8x128xf32> to vector<8xf32>
    %51 = vector.shape_cast %50 : vector<8xf32> to vector<8x1xf32>
    %52 = arith.mulf %46, %46 : vector<8x1xf32>
    %cst_25 = arith.constant 6.400000e+01 : f32
    %53 = vector.broadcast %cst_25 : f32 to vector<8x1xf32>
    %54 = arith.mulf %53, %52 : vector<8x1xf32>
    %55 = arith.subf %51, %54 : vector<8x1xf32>
    %cst_26 = arith.constant 1.562500e-02 : f32
    %56 = vector.broadcast %cst_26 : f32 to vector<8x1xf32>
    %57 = arith.mulf %55, %56 : vector<8x1xf32>
    %cst_27 = arith.constant 9.99999974E-6 : f32
    %58 = vector.broadcast %cst_27 : f32 to vector<8x1xf32>
    %59 = arith.addf %57, %58 : vector<8x1xf32>
    %60 = math.rsqrt %59 : vector<8x1xf32>
    %61 = vector.broadcast %60 : vector<8x1xf32> to vector<8x128xf32>
    %62 = arith.mulf %48, %61 : vector<8x128xf32>
    %c0_28 = arith.constant 0 : index
    %c0_29 = arith.constant 0 : index
    %63 = vector.load %arg8[%c0_28, %c0_29] : memref<1x128xf32, #tpu.memory_space<vmem>>, vector<1x128xf32>
    %64 = vector.broadcast %63 : vector<1x128xf32> to vector<8x128xf32>
    %65 = arith.mulf %62, %64 : vector<8x128xf32>
    %c0_30 = arith.constant 0 : index
    %c0_31 = arith.constant 0 : index
    %66 = vector.load %arg9[%c0_30, %c0_31] : memref<1x128xf32, #tpu.memory_space<vmem>>, vector<1x128xf32>
    %67 = vector.broadcast %66 : vector<1x128xf32> to vector<8x128xf32>
    %68 = arith.addf %65, %67 : vector<8x128xf32>
    %c0_32 = arith.constant 0 : index
    %c0_33 = arith.constant 0 : index
    %69 = vector.load %arg10[%c0_32, %c0_33] : memref<8x128xf32, #tpu.memory_space<vmem>>, vector<8x128xf32>
    tpu.vector_store %arg10[%c0_32, %c0_33], %68 {strides = array<i32>} : memref<8x128xf32, #tpu.memory_space<vmem>>, vector<8x128xf32>,
    return
  }
  func.func @transform_0(%arg0: i32) -> (i32, i32) {
    %c0_i32 = arith.constant 0 : i32
    %c0_i32_0 = arith.constant 0 : i32
    return %arg0, %c0_i32 : i32, i32
  }
  func.func @transform_1(%arg0: i32) -> (i32, i32) {
    %c0_i32 = arith.constant 0 : i32
    %c0_i32_0 = arith.constant 0 : i32
    %c0_i32_1 = arith.constant 0 : i32
    return %c0_i32, %c0_i32_0 : i32, i32
  }
  func.func @transform_2(%arg0: i32) -> (i32, i32) {
    %c0_i32 = arith.constant 0 : i32
    %c0_i32_0 = arith.constant 0 : i32
    %c0_i32_1 = arith.constant 0 : i32
    return %c0_i32, %c0_i32_0 : i32, i32
  }
  func.func @transform_3(%arg0: i32) -> (i32, i32) {
    %c0_i32 = arith.constant 0 : i32
    %c0_i32_0 = arith.constant 0 : i32
    %c0_i32_1 = arith.constant 0 : i32
    return %c0_i32, %c0_i32_0 : i32, i32
  }
  func.func @transform_4(%arg0: i32) -> (i32, i32) {
    %c0_i32 = arith.constant 0 : i32
    %c0_i32_0 = arith.constant 0 : i32
    %c0_i32_1 = arith.constant 0 : i32
    return %c0_i32, %c0_i32_0 : i32, i32
  }
  func.func @transform_5(%arg0: i32) -> (i32, i32) {
    %c0_i32 = arith.constant 0 : i32
    %c0_i32_0 = arith.constant 0 : i32
    %c0_i32_1 = arith.constant 0 : i32
    return %c0_i32, %c0_i32_0 : i32, i32
  }
  func.func @transform_6(%arg0: i32) -> (i32, i32) {
    %c0_i32 = arith.constant 0 : i32
    %c0_i32_0 = arith.constant 0 : i32
    %c0_i32_1 = arith.constant 0 : i32
    return %c0_i32, %c0_i32_0 : i32, i32
  }
  func.func @transform_7(%arg0: i32) -> (i32, i32) {
    %c0_i32 = arith.constant 0 : i32
    %c0_i32_0 = arith.constant 0 : i32
    %c0_i32_1 = arith.constant 0 : i32
    return %c0_i32, %c0_i32_0 : i32, i32
  }
  func.func @transform_8(%arg0: i32) -> (i32, i32) {
    %c0_i32 = arith.constant 0 : i32
    %c0_i32_0 = arith.constant 0 : i32
    %c0_i32_1 = arith.constant 0 : i32
    return %c0_i32, %c0_i32_0 : i32, i32
  }
  func.func @transform_9(%arg0: i32) -> (i32, i32) {
    %c0_i32 = arith.constant 0 : i32
    %c0_i32_0 = arith.constant 0 : i32
    return %arg0, %c0_i32 : i32, i32
  }
}

</mosaic_0001>

<llo_original>
// kernel: tpu_custom_call.1
$region0: #{tpu_custom_call.1}
  #allocation0 [shape = 'u32[]', space=smem, size = 0x4, offset = 0x4, fixed_abs, tag = 'smem constant byte address 0x4 - core index']
  #allocation1 [shape = 'u32[144,128]{1,0:T(1,128)}', space=vmem, size = 0x12000, scoped, tag = 'internal scratch']
  %s0 = inlined_call_operand.hbm [shape: f32[8,128], index: 0, kind: input, shape index: {}]
  %s1 = inlined_call_operand.hbm [shape: bf16[128,128], index: 1, kind: input, shape index: {}]
  %s2 = inlined_call_operand.vmem [shape: f32[1,128], index: 2, kind: input, shape index: {}]
  %s3 = inlined_call_operand.vmem [shape: f32[1,128], index: 3, kind: input, shape index: {}]
  %s4 = inlined_call_operand.vmem [shape: f32[1,128], index: 4, kind: input, shape index: {}]
  %s5 = inlined_call_operand.hbm [shape: bf16[128,128], index: 5, kind: input, shape index: {}]
  %s6 = inlined_call_operand.vmem [shape: f32[1,128], index: 6, kind: input, shape index: {}]
  %s7 = inlined_call_operand.vmem [shape: f32[1,128], index: 7, kind: input, shape index: {}]
  %s8 = inlined_call_operand.vmem [shape: f32[1,128], index: 8, kind: input, shape index: {}]
  %s9 = inlined_call_operand.hbm [shape: f32[8,128], index: 9, kind: output, shape index: {}]
  %s10 = sld [smem:[#allocation0]]
  $region58: #{tpu_custom_call.1} parent=0
    _
  %s12 = ssub.s32 1, %s10
  %s13 = scalar_select 0, %s12, %s10
  $region1: #{tpu_custom_call.1} parent=0
    #allocation2 [shape = 'u8[4096]{0}', space=vmem, size = 0x1000, scoped, tag = 'input window, operand 0, single buffered']
    #allocation3 [shape = 's32[1]{0}', space=sflag, size = 0x4, scoped, tag = 'scoped memory for tpu_custom_call.1']
    #allocation4 [shape = 's32[1]{0}', space=sflag, size = 0x4, scoped, tag = 'scoped memory for tpu_custom_call.1']
    #allocation5 [shape = 'u8[32768]{0}', space=vmem, size = 0x8000, scoped, tag = 'input window, operand 1, single buffered']
    #allocation6 [shape = 's32[1]{0}', space=sflag, size = 0x4, scoped, tag = 'scoped memory for tpu_custom_call.1']
    #allocation7 [shape = 'u8[32768]{0}', space=vmem, size = 0x8000, scoped, tag = 'input window, operand 5, single buffered']
    #allocation8 [shape = 'u8[4096]{0}', space=vmem, size = 0x1000, scoped, tag = 'output window, operand 0, single buffered']
    %14 = vsyncpa [#allocation3], 0
    %15 = vsyncpa [#allocation6], 0
    %16 = vsyncpa [#allocation4], 0
    // Predicated region
    $region2: #{tpu_custom_call.1} parent=1 // pred_check
      _
    $region3: #{tpu_custom_call.1} parent=1 // pred_check_branch
      %18 = sbr.rel (0) target = $region5
    $region4: #{tpu_custom_call.1} parent=1 // pred_region
      %s20 = ssub.s32 128, 128
      %21 = vsyncadd [#allocation3], %s20
      %s23 = sshll.u32 [#allocation2], 4
      %s24 = int_to_ptr.vmem [resolvable:$true] %s23
      %26 = dma.hbm_to_vmem [thread:$0]  %s0, 128, %s24, [#allocation3]
    $region5: #{tpu_custom_call.1} parent=1 // pred_fallthru
      _
    // Predicated region
    $region6: #{tpu_custom_call.1} parent=1 // pred_check
      _
    $region7: #{tpu_custom_call.1} parent=1 // pred_check_branch
      %28 = sbr.rel (0) target = $region9
    $region8: #{tpu_custom_call.1} parent=1 // pred_region
      %s30 = ssub.s32 1024, 1024
      %31 = vsyncadd [#allocation6], %s30
      %s32 = sshll.u32 [#allocation5], 4
      %s33 = int_to_ptr.vmem [resolvable:$true] %s32
      %38 = dma.hbm_to_vmem [thread:$0]  %s1, 1024, %s33, [#allocation6], 64, 64, 4
    $region9: #{tpu_custom_call.1} parent=1 // pred_fallthru
      _
    // Predicated region
    $region10: #{tpu_custom_call.1} parent=1 // pred_check
      _
    $region11: #{tpu_custom_call.1} parent=1 // pred_check_branch
      %40 = sbr.rel (0) target = $region13
    $region12: #{tpu_custom_call.1} parent=1 // pred_region
      _
    $region13: #{tpu_custom_call.1} parent=1 // pred_fallthru
      _
    // Predicated region
    $region14: #{tpu_custom_call.1} parent=1 // pred_check
      _
    $region15: #{tpu_custom_call.1} parent=1 // pred_check_branch
      %42 = sbr.rel (0) target = $region17
    $region16: #{tpu_custom_call.1} parent=1 // pred_region
      _
    $region17: #{tpu_custom_call.1} parent=1 // pred_fallthru
      _
    // Predicated region
    $region18: #{tpu_custom_call.1} parent=1 // pred_check
      _
    $region19: #{tpu_custom_call.1} parent=1 // pred_check_branch
      %44 = sbr.rel (0) target = $region21
    $region20: #{tpu_custom_call.1} parent=1 // pred_region
      _
    $region21: #{tpu_custom_call.1} parent=1 // pred_fallthru
      _
    // Predicated region
    $region22: #{tpu_custom_call.1} parent=1 // pred_check
      _
    $region23: #{tpu_custom_call.1} parent=1 // pred_check_branch
      %46 = sbr.rel (0) target = $region25
    $region24: #{tpu_custom_call.1} parent=1 // pred_region
      %s48 = ssub.s32 1024, 1024
      %49 = vsyncadd [#allocation6], %s48
      %s50 = sshll.u32 [#allocation7], 4
      %s51 = int_to_ptr.vmem [resolvable:$true] %s50
      %56 = dma.hbm_to_vmem [thread:$0]  %s5, 1024, %s51, [#allocation6], 64, 64, 4
    $region25: #{tpu_custom_call.1} parent=1 // pred_fallthru
      _
    // Predicated region
    $region26: #{tpu_custom_call.1} parent=1 // pred_check
      _
    $region27: #{tpu_custom_call.1} parent=1 // pred_check_branch
      %58 = sbr.rel (0) target = $region29
    $region28: #{tpu_custom_call.1} parent=1 // pred_region
      _
    $region29: #{tpu_custom_call.1} parent=1 // pred_fallthru
      _
    // Predicated region
    $region30: #{tpu_custom_call.1} parent=1 // pred_check
      _
    $region31: #{tpu_custom_call.1} parent=1 // pred_check_branch
      %60 = sbr.rel (0) target = $region33
    $region32: #{tpu_custom_call.1} parent=1 // pred_region
      _
    $region33: #{tpu_custom_call.1} parent=1 // pred_fallthru
      _
    // Predicated region
    $region34: #{tpu_custom_call.1} parent=1 // pred_check
      _
    $region35: #{tpu_custom_call.1} parent=1 // pred_check_branch
      %62 = sbr.rel (0) target = $region37
    $region36: #{tpu_custom_call.1} parent=1 // pred_region
      _
    $region37: #{tpu_custom_call.1} parent=1 // pred_fallthru
      _
    // Predicated region
    $region38: #{tpu_custom_call.1} parent=1 // pred_check
      _
    $region39: #{tpu_custom_call.1} parent=1 // pred_check_branch
      %64 = sbr.rel (0) target = $region41
    $region40: #{tpu_custom_call.1} parent=1 // pred_region
      %65 = dma.done [#allocation3], 128
    $region41: #{tpu_custom_call.1} parent=1 // pred_fallthru
      _
    // Predicated region
    $region42: #{tpu_custom_call.1} parent=1 // pred_check
      _
    $region43: #{tpu_custom_call.1} parent=1 // pred_check_branch
      %67 = sbr.rel (0) target = $region45
    $region44: #{tpu_custom_call.1} parent=1 // pred_region
      %68 = dma.done [#allocation6], 1024
    $region45: #{tpu_custom_call.1} parent=1 // pred_fallthru
      _
    // Predicated region
    $region46: #{tpu_custom_call.1} parent=1 // pred_check
      _
    $region47: #{tpu_custom_call.1} parent=1 // pred_check_branch
      %70 = sbr.rel (0) target = $region49
    $region48: #{tpu_custom_call.1} parent=1 // pred_region
      %71 = dma.done [#allocation6], 1024
    $region49: #{tpu_custom_call.1} parent=1 // pred_fallthru
      _
    %v73 = vld [vmem:[#allocation2] sm:$0xff]
    %v74 = vpack.c.bf16 %v73, %v73
    %v75 = vld [vmem:[#allocation5] sm:$0xf]
    %v76 = vld [vmem:[#allocation5 + $0x4] sm:$0xf]
    %v77 = vld [vmem:[#allocation5 + $0x8] sm:$0xf]
    %v78 = vld [vmem:[#allocation5 + $0xc] sm:$0xf]
    %v79 = vld [vmem:[#allocation5 + $0x10] sm:$0xf]
    %v80 = vld [vmem:[#allocation5 + $0x14] sm:$0xf]
    %v81 = vld [vmem:[#allocation5 + $0x18] sm:$0xf]
    %v82 = vld [vmem:[#allocation5 + $0x1c] sm:$0xf]
    %v83 = vld [vmem:[#allocation5 + $0x20] sm:$0xf]
    %v84 = vld [vmem:[#allocation5 + $0x24] sm:$0xf]
    %v85 = vld [vmem:[#allocation5 + $0x28] sm:$0xf]
    %v86 = vld [vmem:[#allocation5 + $0x2c] sm:$0xf]
    %v87 = vld [vmem:[#allocation5 + $0x30] sm:$0xf]
    %v88 = vld [vmem:[#allocation5 + $0x34] sm:$0xf]
    %v89 = vld [vmem:[#allocation5 + $0x38] sm:$0xf]
    %v90 = vld [vmem:[#allocation5 + $0x3c] sm:$0xf]
    %v91 = vld [vmem:[%s2] sm:$0x1]
    %v93 = vlaneseq
    %v94 = vshrl.u32 %v93, 7
    %v95 = vsub.s32 0, %v94
    %v96 = vrot.slane %v91, %v95
    %v114 = vunpack.c.l.b16 %v75
    %v115 = vunpack.c.l.b16 %v76
    %v116 = vunpack.c.l.b16 %v77
    %v117 = vunpack.c.l.b16 %v78
    %v118 = vunpack.c.l.b16 %v79
    %v119 = vunpack.c.l.b16 %v80
    %v120 = vunpack.c.l.b16 %v81
    %v121 = vunpack.c.l.b16 %v82
    %v122 = vunpack.c.l.b16 %v83
    %v123 = vunpack.c.l.b16 %v84
    %v124 = vunpack.c.l.b16 %v85
    %v125 = vunpack.c.l.b16 %v86
    %v126 = vunpack.c.l.b16 %v87
    %v127 = vunpack.c.l.b16 %v88
    %v128 = vunpack.c.l.b16 %v89
    %v129 = vunpack.c.l.b16 %v90
    %v130 = vpack.c.b16 %v115, %v114
    %v131 = vpack.c.b16 %v117, %v116
    %v132 = vpack.c.b16 %v119, %v118
    %v133 = vpack.c.b16 %v121, %v120
    %v134 = vpack.c.b16 %v123, %v122
    %v135 = vpack.c.b16 %v125, %v124
    %v136 = vpack.c.b16 %v127, %v126
    %v137 = vpack.c.b16 %v129, %v128
    %146 = vmatprep.subr.bf16.mxu0 0
    %147 = vmatpush1.bf16.msra.mxu0 %v130
    %148 = vmatprep.subr.bf16.mxu0 0
    %149 = vmatpush1.bf16.msra.mxu0 %v131
    %150 = vmatprep.subr.bf16.mxu0 0
    %151 = vmatpush1.bf16.msra.mxu0 %v132
    %152 = vmatprep.subr.bf16.mxu0 0
    %153 = vmatpush1.bf16.msra.mxu0 %v133
    %154 = vmatprep.subr.bf16.mxu0 0
    %155 = vmatpush1.bf16.msra.mxu0 %v134
    %156 = vmatprep.subr.bf16.mxu0 0
    %157 = vmatpush1.bf16.msra.mxu0 %v135
    %158 = vmatprep.subr.bf16.mxu0 0
    %159 = vmatpush1.bf16.msra.mxu0 %v136
    %160 = vmatprep.subr.bf16.mxu0 0
    %161 = vmatpush1.bf16.msra.mxu0 %v137
    %162 = vmatprep.subr.bf16.mxu0 0
    %163 = vmatpush1.bf16.msra.mxu0 0
    %164 = vmatprep.subr.bf16.mxu0 0
    %165 = vmatpush1.bf16.msra.mxu0 0
    %166 = vmatprep.subr.bf16.mxu0 0
    %167 = vmatpush1.bf16.msra.mxu0 0
    %168 = vmatprep.subr.bf16.mxu0 0
    %169 = vmatpush1.bf16.msra.mxu0 0
    %170 = vmatprep.subr.bf16.mxu0 0
    %171 = vmatpush1.bf16.msra.mxu0 0
    %172 = vmatprep.subr.bf16.mxu0 0
    %173 = vmatpush1.bf16.msra.mxu0 0
    %174 = vmatprep.subr.bf16.mxu0 0
    %175 = vmatpush1.bf16.msra.mxu0 0
    %176 = vmatprep.subr.bf16.mxu0 0
    %177 = vmatpush1.bf16.msra.mxu0 0
    %178 = vmatprep.mubr.bf16.mxu0 0
    %179 = vmatmul.mubr.bf16.gmra.mrb[0].mxu0 %v74
    %v180 = vpop.f32.mrb[0].mxu0
    %v181 = vadd.f32 %v96, %v180
    %v182 = vpop.f32.mrb[0].mxu0
    %v183 = vpop.f32.mrb[0].mxu0
    %v184 = vpop.f32.mrb[0].mxu0
    %185 = vdwg.mxu0
    %v186 = vmax.f32 %v181, 0.0
    %187 = vadd.xlane.f32.xlu0 %v186
    %v188 = vpop.xlane.xlu0 %187
    %v189 = vmul.f32 %v188, 0.015625
    %v190 = vsub.f32 %v186, %v189
    %v191 = vmul.f32 %v190, %v190
    %192 = vadd.xlane.f32.xlu0 %v191
    %v193 = vpop.xlane.xlu0 %192
    %v194 = vmul.f32 %v189, %v189
    %v195 = vmul.f32 %v194, 64.0
    %v196 = vsub.f32 %v193, %v195
    %v197 = vmul.f32 %v196, 0.015625
    %v198 = vadd.f32 %v197, 1e-05
    %v199 = vrsqrt.pop %v198
    %v200 = vmul.f32 %v190, %v199
    %v201 = vld [vmem:[%s3] sm:$0x1]
    %v203 = vlaneseq
    %v204 = vshrl.u32 %v203, 7
    %v205 = vsub.s32 0, %v204
    %v206 = vrot.slane %v201, %v205
    %v208 = vmul.f32 %v200, %v206
    %v209 = vld [vmem:[%s4] sm:$0x1]
    %v211 = vlaneseq
    %v212 = vshrl.u32 %v211, 7
    %v213 = vsub.s32 0, %v212
    %v214 = vrot.slane %v209, %v213
    %v216 = vadd.f32 %v208, %v214
    %v217 = vpack.c.bf16 %v216, %v216
    %v218 = vld [vmem:[#allocation7] sm:$0xf]
    %v219 = vld [vmem:[#allocation7 + $0x4] sm:$0xf]
    %v220 = vld [vmem:[#allocation7 + $0x8] sm:$0xf]
    %v221 = vld [vmem:[#allocation7 + $0xc] sm:$0xf]
    %v222 = vld [vmem:[#allocation7 + $0x10] sm:$0xf]
    %v223 = vld [vmem:[#allocation7 + $0x14] sm:$0xf]
    %v224 = vld [vmem:[#allocation7 + $0x18] sm:$0xf]
    %v225 = vld [vmem:[#allocation7 + $0x1c] sm:$0xf]
    %v226 = vld [vmem:[#allocation7 + $0x20] sm:$0xf]
    %v227 = vld [vmem:[#allocation7 + $0x24] sm:$0xf]
    %v228 = vld [vmem:[#allocation7 + $0x28] sm:$0xf]
    %v229 = vld [vmem:[#allocation7 + $0x2c] sm:$0xf]
    %v230 = vld [vmem:[#allocation7 + $0x30] sm:$0xf]
    %v231 = vld [vmem:[#allocation7 + $0x34] sm:$0xf]
    %v232 = vld [vmem:[#allocation7 + $0x38] sm:$0xf]
    %v233 = vld [vmem:[#allocation7 + $0x3c] sm:$0xf]
    %v234 = vld [vmem:[%s6] sm:$0x1]
    %v236 = vlaneseq
    %v237 = vshrl.u32 %v236, 7
    %v238 = vsub.s32 0, %v237
    %v239 = vrot.slane %v234, %v238
    %v257 = vunpack.c.l.b16 %v218
    %v258 = vunpack.c.l.b16 %v219
    %v259 = vunpack.c.l.b16 %v220
    %v260 = vunpack.c.l.b16 %v221
    %v261 = vunpack.c.l.b16 %v222
    %v262 = vunpack.c.l.b16 %v223
    %v263 = vunpack.c.l.b16 %v224
    %v264 = vunpack.c.l.b16 %v225
    %v265 = vunpack.c.l.b16 %v226
    %v266 = vunpack.c.l.b16 %v227
    %v267 = vunpack.c.l.b16 %v228
    %v268 = vunpack.c.l.b16 %v229
    %v269 = vunpack.c.l.b16 %v230
    %v270 = vunpack.c.l.b16 %v231
    %v271 = vunpack.c.l.b16 %v232
    %v272 = vunpack.c.l.b16 %v233
    %v273 = vpack.c.b16 %v258, %v257
    %v274 = vpack.c.b16 %v260, %v259
    %v275 = vpack.c.b16 %v262, %v261
    %v276 = vpack.c.b16 %v264, %v263
    %v277 = vpack.c.b16 %v266, %v265
    %v278 = vpack.c.b16 %v268, %v267
    %v279 = vpack.c.b16 %v270, %v269
    %v280 = vpack.c.b16 %v272, %v271
    %289 = vmatprep.subr.bf16.mxu0 0
    %290 = vmatpush1.bf16.msra.mxu0 %v273
    %291 = vmatprep.subr.bf16.mxu0 0
    %292 = vmatpush1.bf16.msra.mxu0 %v274
    %293 = vmatprep.subr.bf16.mxu0 0
    %294 = vmatpush1.bf16.msra.mxu0 %v275
    %295 = vmatprep.subr.bf16.mxu0 0
    %296 = vmatpush1.bf16.msra.mxu0 %v276
    %297 = vmatprep.subr.bf16.mxu0 0
    %298 = vmatpush1.bf16.msra.mxu0 %v277
    %299 = vmatprep.subr.bf16.mxu0 0
    %300 = vmatpush1.bf16.msra.mxu0 %v278
    %301 = vmatprep.subr.bf16.mxu0 0
    %302 = vmatpush1.bf16.msra.mxu0 %v279
    %303 = vmatprep.subr.bf16.mxu0 0
    %304 = vmatpush1.bf16.msra.mxu0 %v280
    %305 = vmatprep.subr.bf16.mxu0 0
    %306 = vmatpush1.bf16.msra.mxu0 0
    %307 = vmatprep.subr.bf16.mxu0 0
    %308 = vmatpush1.bf16.msra.mxu0 0
    %309 = vmatprep.subr.bf16.mxu0 0
    %310 = vmatpush1.bf16.msra.mxu0 0
    %311 = vmatprep.subr.bf16.mxu0 0
    %312 = vmatpush1.bf16.msra.mxu0 0
    %313 = vmatprep.subr.bf16.mxu0 0
    %314 = vmatpush1.bf16.msra.mxu0 0
    %315 = vmatprep.subr.bf16.mxu0 0
    %316 = vmatpush1.bf16.msra.mxu0 0
    %317 = vmatprep.subr.bf16.mxu0 0
    %318 = vmatpush1.bf16.msra.mxu0 0
    %319 = vmatprep.subr.bf16.mxu0 0
    %320 = vmatpush1.bf16.msra.mxu0 0
    %321 = vmatprep.mubr.bf16.mxu0 0
    %322 = vmatmul.mubr.bf16.gmra.mrb[0].mxu0 %v217
    %v323 = vpop.f32.mrb[0].mxu0
    %v324 = vadd.f32 %v239, %v323
    %v325 = vpop.f32.mrb[0].mxu0
    %v326 = vpop.f32.mrb[0].mxu0
    %v327 = vpop.f32.mrb[0].mxu0
    %328 = vdwg.mxu0
    %v329 = vmax.f32 %v324, 0.0
    %330 = vadd.xlane.f32.xlu0 %v329
    %v331 = vpop.xlane.xlu0 %330
    %v332 = vmul.f32 %v331, 0.015625
    %v333 = vsub.f32 %v329, %v332
    %v334 = vmul.f32 %v333, %v333
    %335 = vadd.xlane.f32.xlu0 %v334
    %v336 = vpop.xlane.xlu0 %335
    %v337 = vmul.f32 %v332, %v332
    %v338 = vmul.f32 %v337, 64.0
    %v339 = vsub.f32 %v336, %v338
    %v340 = vmul.f32 %v339, 0.015625
    %v341 = vadd.f32 %v340, 1e-05
    %v342 = vrsqrt.pop %v341
    %v343 = vmul.f32 %v333, %v342
    %v344 = vld [vmem:[%s7] sm:$0x1]
    %v346 = vlaneseq
    %v347 = vshrl.u32 %v346, 7
    %v348 = vsub.s32 0, %v347
    %v349 = vrot.slane %v344, %v348
    %v351 = vmul.f32 %v343, %v349
    %v352 = vld [vmem:[%s8] sm:$0x1]
    %v354 = vlaneseq
    %v355 = vshrl.u32 %v354, 7
    %v356 = vsub.s32 0, %v355
    %v357 = vrot.slane %v352, %v356
    %v359 = vadd.f32 %v351, %v357
    %360 = vst [vmem:[#allocation8] sm:$0xff] %v359
    // Predicated region
    $region50: #{tpu_custom_call.1} parent=1 // pred_check
      _
    $region51: #{tpu_custom_call.1} parent=1 // pred_check_branch
      %362 = sbr.rel (0) target = $region53
    $region52: #{tpu_custom_call.1} parent=1 // pred_region
      %s364 = ssub.s32 128, 128
      %365 = vsyncadd [#allocation4], %s364
      %s367 = sshll.u32 [#allocation8], 4
      %s368 = int_to_ptr.vmem [resolvable:$true] %s367
      %370 = dma.vmem_to_hbm [thread:$0]  %s368, 128, %s9, [#allocation4]
    $region53: #{tpu_custom_call.1} parent=1 // pred_fallthru
      _
    // Predicated region
    $region54: #{tpu_custom_call.1} parent=1 // pred_check
      _
    $region55: #{tpu_custom_call.1} parent=1 // pred_check_branch
      %372 = sbr.rel (0) target = $region57
    $region56: #{tpu_custom_call.1} parent=1 // pred_region
      %373 = dma.done [#allocation4], 128
    $region57: #{tpu_custom_call.1} parent=1 // pred_fallthru
      _
    %374 = vsyncpa [#allocation3], 1
    %375 = vsyncpa [#allocation6], 1
    %376 = vsyncpa [#allocation4], 1

</llo_original>
